<compile_context>
chip_gen: v7x
topology: tpu7x:2x2x1
jax: 0.10.0
libtpu: 0.0.40
codegen_flags: <defaults>
</compile_context>

<pallas_src>
import functools

import jax
import jax.numpy as jnp
from jax.experimental import pallas as pl
from jax.experimental.pallas import tpu as pltpu


def _soft_hd_kernel(x1_ref, x2_ref, w1_ref, b1_ref, w2_ref, out_ref, *, n1, n2):
    f32 = jnp.float32
    x1 = x1_ref[...]                          # (Bb, N1p, Dp)   [h | pos]
    x2 = x2_ref[...]                          # (Bb, N2p, Dp)
    Bb, N1p, Dp = x1.shape
    N2p = x2.shape[1]
    Hp = w1_ref.shape[1]

    # ---- pairwise half-squared distances via the Gram identity (MXU) --------
    #   dist[i,j] = 0.5*|x1_i|^2 + 0.5*|x2_j|^2 - x1_i . x2_j   (clamped at 0)
    x2sq = x2 * x2
    hn1 = 0.5 * jnp.sum(x1 * x1, axis=-1, keepdims=True)            # (Bb, N1p, 1)
    half_row = jnp.full((Bb, 1, Dp), 0.5, f32)
    hn2 = jnp.einsum('bkd,bnd->bkn', half_row, x2sq,
                     preferred_element_type=f32)                    # (Bb, 1, N2p)
    g = jnp.einsum('bnd,bmd->bnm', x1, x2, preferred_element_type=f32)
    dist = jnp.maximum(hn1 + hn2 - g, 0.0)                          # (Bb, N1p, N2p)

    # ---- node ins/del cost MLP: 0.5 + |W2 relu(W1 h + b1) + b2| -------------
    # Two matmuls against the resident W1 (no in-kernel concat); second layer
    # folded onto the MXU; b2 lives in hidden column H (forced to 1 by b1).
    w1 = w1_ref[...]
    b1 = b1_ref[...]
    hid1 = jnp.maximum(jnp.dot(x1.reshape(Bb * N1p, Dp), w1,
                               preferred_element_type=f32) + b1, 0.0)
    hid2 = jnp.maximum(jnp.dot(x2.reshape(Bb * N2p, Dp), w1,
                               preferred_element_type=f32) + b1, 0.0)
    w2_b = jnp.broadcast_to(w2_ref[...][None], (Bb, 1, Hp))
    d1 = 0.5 + jnp.abs(jnp.einsum('bnh,bkh->bnk', hid1.reshape(Bb, N1p, Hp),
                                  w2_b, preferred_element_type=f32))   # (Bb,N1p,1)
    d2 = 0.5 + jnp.abs(jnp.einsum('bkh,bnh->bkn', w2_b,
                                  hid2.reshape(Bb, N2p, Hp),
                                  preferred_element_type=f32))          # (Bb,1,N2p)

    # ---- masks (only traced when node padding exists; static decision) ------
    if N1p != n1 or N2p != n2:
        row_ok = jax.lax.broadcasted_iota(jnp.int32, (Bb, N1p, N2p), 1) < n1
        col_ok = jax.lax.broadcasted_iota(jnp.int32, (Bb, N1p, N2p), 2) < n2
        dist = jnp.where(row_ok & col_ok, dist, jnp.inf)

    # ---- soft Hausdorff ------------------------------------------------------
    b_v = jnp.minimum(jnp.min(dist, axis=2, keepdims=True), d1)     # (Bb, N1p, 1)
    a_v = jnp.minimum(jnp.min(dist, axis=1, keepdims=True), d2)     # (Bb, 1, N2p)
    if N1p != n1:
        rmask = jax.lax.broadcasted_iota(jnp.int32, (Bb, N1p, 1), 1) < n1
        b_v = jnp.where(rmask, b_v, 0.0)
    if N2p != n2:
        cmask = jax.lax.broadcasted_iota(jnp.int32, (Bb, 1, N2p), 2) < n2
        a_v = jnp.where(cmask, a_v, 0.0)

    tot = jnp.sum(b_v, axis=1) + jnp.sum(a_v, axis=2)               # (Bb, 1)
    d = tot * (1.0 / float(n1 + n2))
    # Lane-dense write: (Bb, 1) -> (1, Bb) via a tiny XLU transpose.
    out_ref[...] = jnp.transpose(d, (1, 0))[None]                   # (1, 1, Bb)


def soft_hd_pairs(h1, h2, p1, p2, w1, b1, w2_row, b2, *, block_pairs=128):
    """'pairs' mode forward: returns [B] soft-Hausdorff distances, one per pair."""
    f32 = jnp.float32
    B, N1, D = h1.shape
    _, N2, _ = h2.shape
    P = p1.shape[-1]
    H = w1.shape[-1]

    # Feature+position stream.  The lane dim stays at Dp (no 128-lane zero
    # padding in HBM): a full-array last dim is a legal BlockSpec tile and
    # Mosaic pads lanes internally for the matmuls.
    Dp = D + P
    # Hidden dim padded to one 128-lane tile; column H carries the b2 bias.
    Hp = ((H + 1 + 127) // 128) * 128

    # Node counts padded to sublane multiples so in-kernel reshapes are views.
    N1p = ((N1 + 7) // 8) * 8
    N2p = ((N2 + 7) // 8) * 8

    x1 = jnp.concatenate([h1, p1], axis=-1).astype(f32)
    x2 = jnp.concatenate([h2, p2], axis=-1).astype(f32)
    if N1p != N1:
        x1 = jnp.pad(x1, ((0, 0), (0, N1p - N1), (0, 0)))
    if N2p != N2:
        x2 = jnp.pad(x2, ((0, 0), (0, N2p - N2), (0, 0)))

    # ---- block sizing from a VMEM budget -------------------------------------
    bytes_per_pair = 4 * (
        2 * (N1p + N2p) * Dp        # double-buffered x1/x2 blocks
        + 3 * N1p * N2p             # dist + elementwise temps
        + (N1p + N2p) * Hp          # hid1 / hid2
        + 8 * (N1p + N2p)           # norms / costs / mins
    )
    weight_bytes = 4 * (Dp * Hp + 2 * Hp)
    vmem_budget = 20 * (1 << 20)    # conservative working-set budget (v5e..v7x)
    fit = max(1, vmem_budget // max(bytes_per_pair, 1))
    B_blk = int(max(1, min(block_pairs, B, fit)))
    G = -(-B // B_blk)
    B_pad = G * B_blk
    if B_pad != B:
        x1 = jnp.pad(x1, ((0, B_pad - B), (0, 0), (0, 0)))
        x2 = jnp.pad(x2, ((0, B_pad - B), (0, 0), (0, 0)))
    # NOTE: on v7x (2 TensorCores) prefer block_pairs small enough that G >= 2
    # so the 'parallel' grid axis can be sharded across both cores.

    vmem_limit = int(min(48 * (1 << 20),
                         max(16 * (1 << 20),
                             2 * bytes_per_pair * B_blk + weight_bytes + (4 << 20))))

    # Padded MLP params:
    #   rows D..Dp-1 of w1p are zero (positions do not feed the MLP);
    #   cols H..Hp-1 are zero except col H, whose pre-activation is forced to 1
    #   via b1p so that w2p[col H] = b2 adds the second-layer bias.
    w1p = jnp.zeros((Dp, Hp), f32).at[:D, :H].set(w1.astype(f32))
    b1p = jnp.zeros((1, Hp), f32).at[:, :H].set(b1.astype(f32).reshape(1, H))
    b1p = b1p.at[0, H].set(1.0)
    b2s = jnp.asarray(b2, f32).reshape(-1)[0]
    w2p = jnp.zeros((1, Hp), f32).at[:, :H].set(w2_row.astype(f32).reshape(1, H))
    w2p = w2p.at[0, H].set(b2s)

    kernel = functools.partial(_soft_hd_kernel, n1=N1, n2=N2)

    out = pl.pallas_call(
        kernel,
        out_shape=jax.ShapeDtypeStruct((G, 1, B_blk), f32),   # lane-dense output
        grid=(G,),
        in_specs=[
            pl.BlockSpec((B_blk, N1p, Dp), lambda i: (i, 0, 0)),
            pl.BlockSpec((B_blk, N2p, Dp), lambda i: (i, 0, 0)),
            pl.BlockSpec((Dp, Hp), lambda i: (0, 0)),
            pl.BlockSpec((1, Hp), lambda i: (0, 0)),
            pl.BlockSpec((1, Hp), lambda i: (0, 0)),
        ],
        out_specs=pl.BlockSpec((1, 1, B_blk), lambda i: (i, 0, 0)),
        compiler_params=pltpu.CompilerParams(
            dimension_semantics=("parallel",),
            vmem_limit_bytes=vmem_limit),
    )(x1, x2, w1p, b1p, w2p)

    return out.reshape(-1)[:B]


def soft_hd_reference(h1, h2, p1, p2, w1, b1, w2_row, b2):
    """Pure-JAX reference mirroring SoftHd.soft_hausdorff (train=True)."""
    def one_pair(h1i, h2i, p1i, p2i):
        sd = jnp.sum((p1i[:, None, :] - p2i[None, :, :]) ** 2, axis=-1)
        fd = jnp.sum((h1i[:, None, :] - h2i[None, :, :]) ** 2, axis=-1)
        dist = (sd + fd) / 2.0

        def cost(h):
            hid = jnp.maximum(h @ w1 + b1, 0.0)
            return 0.5 + jnp.abs(jnp.sum(hid * w2_row, axis=-1) + b2[0, 0])

        d1 = cost(h1i)
        d2 = cost(h2i)
        a = jnp.minimum(jnp.min(dist, axis=0), d2)
        b = jnp.minimum(jnp.min(dist, axis=1), d1)
        return (jnp.sum(a) + jnp.sum(b)) / (a.shape[0] + b.shape[0])

    return jax.vmap(one_pair)(h1, h2, p1, p2)


if __name__ == "__main__":
    key = jax.random.PRNGKey(0)
    B, N1, N2, D, P, H = 2, 8, 16, 32, 2, 64

    k = jax.random.split(key, 8)
    h1 = jax.random.normal(k[0], (B, N1, D), dtype=jnp.float32)
    h2 = jax.random.normal(k[1], (B, N2, D), dtype=jnp.float32)
    p1 = jax.random.uniform(k[2], (B, N1, P), dtype=jnp.float32)
    p2 = jax.random.uniform(k[3], (B, N2, P), dtype=jnp.float32)

    # Deterministic synthetic MLP params (node_ins_del_cost: D -> 64 -> 1).
    w1 = jax.random.normal(k[4], (D, H), dtype=jnp.float32) * (1.0 / jnp.sqrt(D))
    b1 = jax.random.normal(k[5], (1, H), dtype=jnp.float32) * 0.1
    w2_row = jax.random.normal(k[6], (1, H), dtype=jnp.float32) * (1.0 / jnp.sqrt(H))
    b2 = jax.random.normal(k[7], (1, 1), dtype=jnp.float32) * 0.1

    d = soft_hd_pairs(h1, h2, p1, p2, w1, b1, w2_row, b2)
    d = jax.block_until_ready(d)

    d_ref = soft_hd_reference(h1, h2, p1, p2, w1, b1, w2_row, b2)
    assert d.shape == (B,)
    assert jnp.allclose(d, d_ref, rtol=1e-3, atol=1e-3), (d, d_ref)

    print("KERNEL_OK")
</pallas_src>

<mosaic_0001>
module attributes {stable_mosaic.version = 11 : i64} {
  func.func @_soft_hd_kernel(%arg0: i32, %arg1: memref<2x8x34xf32, #tpu.memory_space<vmem>>, %arg2: memref<2x16x34xf32, #tpu.memory_space<vmem>>, %arg3: memref<34x128xf32, #tpu.memory_space<vmem>>, %arg4: memref<1x128xf32, #tpu.memory_space<vmem>>, %arg5: memref<1x128xf32, #tpu.memory_space<vmem>>, %arg6: memref<1x1x2xf32, #tpu.memory_space<vmem>>) attributes {dimension_semantics = [#tpu.dimension_semantics<parallel>], iteration_bounds = array<i64: 1>, scalar_prefetch = 0 : i64, scratch_operands = 0 : i64, tpu.core_type = #tpu.core_type<tc>, window_params = [{transform_indices = @transform_0, window_bounds = array<i64: 2, 8, 34>}, {transform_indices = @transform_1, window_bounds = array<i64: 2, 16, 34>}, {pipeline_mode = #tpu.pipeline_mode<synchronous>, transform_indices = @transform_2, window_bounds = array<i64: 34, 128>}, {pipeline_mode = #tpu.pipeline_mode<synchronous>, transform_indices = @transform_3, window_bounds = array<i64: 1, 128>}, {pipeline_mode = #tpu.pipeline_mode<synchronous>, transform_indices = @transform_4, window_bounds = array<i64: 1, 128>}, {transform_indices = @transform_5, window_bounds = array<i64: 1, 1, 2>}]} {
    %c0 = arith.constant 0 : index
    %c0_0 = arith.constant 0 : index
    %c0_1 = arith.constant 0 : index
    %0 = vector.load %arg1[%c0, %c0_0, %c0_1] : memref<2x8x34xf32, #tpu.memory_space<vmem>>, vector<2x8x34xf32>
    %c0_2 = arith.constant 0 : index
    %c0_3 = arith.constant 0 : index
    %c0_4 = arith.constant 0 : index
    %1 = vector.load %arg2[%c0_2, %c0_3, %c0_4] : memref<2x16x34xf32, #tpu.memory_space<vmem>>, vector<2x16x34xf32>
    %2 = arith.mulf %1, %1 : vector<2x16x34xf32>
    %3 = arith.mulf %0, %0 : vector<2x8x34xf32>
    %cst = arith.constant dense<0.000000e+00> : vector<2x8xf32>
    %4 = vector.multi_reduction <add>, %3, %cst [2] : vector<2x8x34xf32> to vector<2x8xf32>
    %5 = vector.shape_cast %4 : vector<2x8xf32> to vector<2x8x1xf32>
    %cst_5 = arith.constant 5.000000e-01 : f32
    %6 = vector.broadcast %cst_5 : f32 to vector<2x8x1xf32>
    %7 = arith.mulf %6, %5 : vector<2x8x1xf32>
    %cst_6 = arith.constant 5.000000e-01 : f32
    %8 = vector.broadcast %cst_6 : f32 to vector<2x1x34xf32>
    "tpu.trace_start"() <{level = 10 : i32, message = "bkd,bnd->bkn"}> : () -> ()
    %cst_7 = arith.constant dense<0.000000e+00> : vector<2x1x16xf32>
    %9 = tpu.matmul %8, %2, %cst_7 {dimension_numbers = #tpu.dot_dimension_numbers<[2], [2], [1], [1], [0, 0, 0, 1, 1, 1], [0], [0]>} : vector<2x1x34xf32>, vector<2x16x34xf32>, vector<2x1x16xf32> -> vector<2x1x16xf32>
    "tpu.trace_stop"() : () -> ()
    "tpu.trace_start"() <{level = 10 : i32, message = "bnd,bmd->bnm"}> : () -> ()
    %cst_8 = arith.constant dense<0.000000e+00> : vector<2x8x16xf32>
    %10 = tpu.matmul %0, %1, %cst_8 {dimension_numbers = #tpu.dot_dimension_numbers<[2], [2], [1], [1], [0, 0, 0, 1, 1, 1], [0], [0]>} : vector<2x8x34xf32>, vector<2x16x34xf32>, vector<2x8x16xf32> -> vector<2x8x16xf32>
    "tpu.trace_stop"() : () -> ()
    %11 = vector.broadcast %7 : vector<2x8x1xf32> to vector<2x8x16xf32>
    %12 = vector.broadcast %9 : vector<2x1x16xf32> to vector<2x8x16xf32>
    %13 = arith.addf %11, %12 : vector<2x8x16xf32>
    %14 = arith.subf %13, %10 : vector<2x8x16xf32>
    %cst_9 = arith.constant 0.000000e+00 : f32
    %15 = vector.broadcast %cst_9 : f32 to vector<2x8x16xf32>
    %16 = arith.maximumf %14, %15 : vector<2x8x16xf32>
    %c0_10 = arith.constant 0 : index
    %c0_11 = arith.constant 0 : index
    %17 = vector.load %arg3[%c0_10, %c0_11] : memref<34x128xf32, #tpu.memory_space<vmem>>, vector<34x128xf32>
    %c0_12 = arith.constant 0 : index
    %c0_13 = arith.constant 0 : index
    %18 = vector.load %arg4[%c0_12, %c0_13] : memref<1x128xf32, #tpu.memory_space<vmem>>, vector<1x128xf32>
    %19 = vector.shape_cast %0 : vector<2x8x34xf32> to vector<16x34xf32>
    %cst_14 = arith.constant dense<0.000000e+00> : vector<16x128xf32>
    %20 = tpu.matmul %19, %17, %cst_14 {dimension_numbers = #tpu.dot_dimension_numbers<[1], [0], [0], [1], [0, 0, 1, 1], [], []>} : vector<16x34xf32>, vector<34x128xf32>, vector<16x128xf32> -> vector<16x128xf32>
    %21 = vector.broadcast %18 : vector<1x128xf32> to vector<16x128xf32>
    %22 = arith.addf %20, %21 : vector<16x128xf32>
    %cst_15 = arith.constant 0.000000e+00 : f32
    %23 = vector.broadcast %cst_15 : f32 to vector<16x128xf32>
    %24 = arith.maximumf %22, %23 : vector<16x128xf32>
    %25 = vector.shape_cast %1 : vector<2x16x34xf32> to vector<32x34xf32>
    %cst_16 = arith.constant dense<0.000000e+00> : vector<32x128xf32>
    %26 = tpu.matmul %25, %17, %cst_16 {dimension_numbers = #tpu.dot_dimension_numbers<[1], [0], [0], [1], [0, 0, 1, 1], [], []>} : vector<32x34xf32>, vector<34x128xf32>, vector<32x128xf32> -> vector<32x128xf32>
    %27 = vector.broadcast %18 : vector<1x128xf32> to vector<32x128xf32>
    %28 = arith.addf %26, %27 : vector<32x128xf32>
    %cst_17 = arith.constant 0.000000e+00 : f32
    %29 = vector.broadcast %cst_17 : f32 to vector<32x128xf32>
    %30 = arith.maximumf %28, %29 : vector<32x128xf32>
    %c0_18 = arith.constant 0 : index
    %c0_19 = arith.constant 0 : index
    %31 = vector.load %arg5[%c0_18, %c0_19] : memref<1x128xf32, #tpu.memory_space<vmem>>, vector<1x128xf32>
    %32 = vector.shape_cast %31 : vector<1x128xf32> to vector<1x1x128xf32>
    %33 = vector.shape_cast %32 : vector<1x1x128xf32> to vector<1x1x128xf32>
    %34 = vector.broadcast %33 : vector<1x1x128xf32> to vector<2x1x128xf32>
    %35 = vector.shape_cast %24 : vector<16x128xf32> to vector<2x8x128xf32>
    "tpu.trace_start"() <{level = 10 : i32, message = "bnh,bkh->bnk"}> : () -> ()
    %cst_20 = arith.constant dense<0.000000e+00> : vector<2x8x1xf32>
    %36 = tpu.matmul %35, %34, %cst_20 {dimension_numbers = #tpu.dot_dimension_numbers<[2], [2], [1], [1], [0, 0, 0, 1, 1, 1], [0], [0]>} : vector<2x8x128xf32>, vector<2x1x128xf32>, vector<2x8x1xf32> -> vector<2x8x1xf32>
    "tpu.trace_stop"() : () -> ()
    %37 = math.absf %36 : vector<2x8x1xf32>
    %cst_21 = arith.constant 5.000000e-01 : f32
    %38 = vector.broadcast %cst_21 : f32 to vector<2x8x1xf32>
    %39 = arith.addf %38, %37 : vector<2x8x1xf32>
    %40 = vector.shape_cast %30 : vector<32x128xf32> to vector<2x16x128xf32>
    "tpu.trace_start"() <{level = 10 : i32, message = "bkh,bnh->bkn"}> : () -> ()
    %cst_22 = arith.constant dense<0.000000e+00> : vector<2x1x16xf32>
    %41 = tpu.matmul %34, %40, %cst_22 {dimension_numbers = #tpu.dot_dimension_numbers<[2], [2], [1], [1], [0, 0, 0, 1, 1, 1], [0], [0]>} : vector<2x1x128xf32>, vector<2x16x128xf32>, vector<2x1x16xf32> -> vector<2x1x16xf32>
    "tpu.trace_stop"() : () -> ()
    %42 = math.absf %41 : vector<2x1x16xf32>
    %cst_23 = arith.constant 5.000000e-01 : f32
    %43 = vector.broadcast %cst_23 : f32 to vector<2x1x16xf32>
    %44 = arith.addf %43, %42 : vector<2x1x16xf32>
    %cst_24 = arith.constant dense<0x7F800000> : vector<2x8xf32>
    %45 = vector.multi_reduction <minimumf>, %16, %cst_24 [2] : vector<2x8x16xf32> to vector<2x8xf32>
    %46 = vector.shape_cast %45 : vector<2x8xf32> to vector<2x8x1xf32>
    %47 = arith.minimumf %46, %39 : vector<2x8x1xf32>
    %cst_25 = arith.constant dense<0x7F800000> : vector<2x16xf32>
    %48 = vector.multi_reduction <minimumf>, %16, %cst_25 [1] : vector<2x8x16xf32> to vector<2x16xf32>
    %49 = vector.shape_cast %48 : vector<2x16xf32> to vector<2x1x16xf32>
    %50 = arith.minimumf %49, %44 : vector<2x1x16xf32>
    %cst_26 = arith.constant dense<0.000000e+00> : vector<2x1xf32>
    %51 = vector.multi_reduction <add>, %47, %cst_26 [1] : vector<2x8x1xf32> to vector<2x1xf32>
    %cst_27 = arith.constant dense<0.000000e+00> : vector<2x1xf32>
    %52 = vector.multi_reduction <add>, %50, %cst_27 [2] : vector<2x1x16xf32> to vector<2x1xf32>
    %53 = arith.addf %51, %52 : vector<2x1xf32>
    %cst_28 = arith.constant 0.0416666679 : f32
    %54 = vector.broadcast %cst_28 : f32 to vector<2x1xf32>
    %55 = arith.mulf %53, %54 : vector<2x1xf32>
    %56 = tpu.transpose %55, [1, 0] : vector<2x1xf32> -> vector<1x2xf32>
    %57 = vector.shape_cast %56 : vector<1x2xf32> to vector<1x1x2xf32>
    %c0_29 = arith.constant 0 : index
    %c0_30 = arith.constant 0 : index
    %c0_31 = arith.constant 0 : index
    %58 = vector.load %arg6[%c0_29, %c0_30, %c0_31] : memref<1x1x2xf32, #tpu.memory_space<vmem>>, vector<1x1x2xf32>
    tpu.vector_store %arg6[%c0_29, %c0_30, %c0_31], %57 {strides = array<i32>} : memref<1x1x2xf32, #tpu.memory_space<vmem>>, vector<1x1x2xf32>,
    return
  }
  func.func @transform_0(%arg0: i32) -> (i32, i32, i32) {
    %c0_i32 = arith.constant 0 : i32
    %c0_i32_0 = arith.constant 0 : i32
    %c0_i32_1 = arith.constant 0 : i32
    return %arg0, %c0_i32, %c0_i32_0 : i32, i32, i32
  }
  func.func @transform_1(%arg0: i32) -> (i32, i32, i32) {
    %c0_i32 = arith.constant 0 : i32
    %c0_i32_0 = arith.constant 0 : i32
    %c0_i32_1 = arith.constant 0 : i32
    return %arg0, %c0_i32, %c0_i32_0 : i32, i32, i32
  }
  func.func @transform_2(%arg0: i32) -> (i32, i32) {
    %c0_i32 = arith.constant 0 : i32
    %c0_i32_0 = arith.constant 0 : i32
    %c0_i32_1 = arith.constant 0 : i32
    return %c0_i32, %c0_i32_0 : i32, i32
  }
  func.func @transform_3(%arg0: i32) -> (i32, i32) {
    %c0_i32 = arith.constant 0 : i32
    %c0_i32_0 = arith.constant 0 : i32
    %c0_i32_1 = arith.constant 0 : i32
    return %c0_i32, %c0_i32_0 : i32, i32
  }
  func.func @transform_4(%arg0: i32) -> (i32, i32) {
    %c0_i32 = arith.constant 0 : i32
    %c0_i32_0 = arith.constant 0 : i32
    %c0_i32_1 = arith.constant 0 : i32
    return %c0_i32, %c0_i32_0 : i32, i32
  }
  func.func @transform_5(%arg0: i32) -> (i32, i32, i32) {
    %c0_i32 = arith.constant 0 : i32
    %c0_i32_0 = arith.constant 0 : i32
    %c0_i32_1 = arith.constant 0 : i32
    return %arg0, %c0_i32, %c0_i32_0 : i32, i32, i32
  }
}

</mosaic_0001>

<llo_original>
// kernel: tpu_custom_call.1
$region0: #{tpu_custom_call.1}
  #allocation0 [shape = 'u32[]', space=smem, size = 0x4, offset = 0x4, fixed_abs, tag = 'smem constant byte address 0x4 - core index']
  #allocation1 [shape = 'u32[144,128]{1,0:T(1,128)}', space=vmem, size = 0x12000, scoped, tag = 'internal scratch']
  %s0 = inlined_call_operand.hbm [shape: f32[2,8,34], index: 0, kind: input, shape index: {}]
  %s1 = inlined_call_operand.hbm [shape: f32[2,16,34], index: 1, kind: input, shape index: {}]
  %s2 = inlined_call_operand.hbm [shape: f32[34,128], index: 2, kind: input, shape index: {}]
  %s3 = inlined_call_operand.vmem [shape: f32[1,128], index: 3, kind: input, shape index: {}]
  %s4 = inlined_call_operand.vmem [shape: f32[1,128], index: 4, kind: input, shape index: {}]
  %s5 = inlined_call_operand.hbm [shape: f32[1,1,2], index: 5, kind: output, shape index: {}]
  %s6 = sld [smem:[#allocation0]]
  $region42: #{tpu_custom_call.1} parent=0
    _
  %s8 = ssub.s32 1, %s6
  %s9 = scalar_select 0, %s8, %s6
  $region1: #{tpu_custom_call.1} parent=0
    #allocation2 [shape = 'u8[8192]{0}', space=vmem, size = 0x2000, scoped, tag = 'input window, operand 0, single buffered']
    #allocation3 [shape = 's32[1]{0}', space=sflag, size = 0x4, scoped, tag = 'scoped memory for tpu_custom_call.1']
    #allocation4 [shape = 's32[1]{0}', space=sflag, size = 0x4, scoped, tag = 'scoped memory for tpu_custom_call.1']
    #allocation5 [shape = 'u8[16384]{0}', space=vmem, size = 0x4000, scoped, tag = 'input window, operand 1, single buffered']
    #allocation6 [shape = 's32[1]{0}', space=sflag, size = 0x4, scoped, tag = 'scoped memory for tpu_custom_call.1']
    #allocation7 [shape = 'u8[20480]{0}', space=vmem, size = 0x5000, scoped, tag = 'input window, operand 2, single buffered']
    #allocation8 [shape = 'u8[512]{0}', space=vmem, size = 0x400, scoped, tag = 'output window, operand 0, single buffered']
    %10 = vsyncpa [#allocation3], 0
    %11 = vsyncpa [#allocation6], 0
    %12 = vsyncpa [#allocation4], 0
    // Predicated region
    $region2: #{tpu_custom_call.1} parent=1 // pred_check
      _
    $region3: #{tpu_custom_call.1} parent=1 // pred_check_branch
      %14 = sbr.rel (0) target = $region5
    $region4: #{tpu_custom_call.1} parent=1 // pred_region
      %s16 = ssub.s32 256, 256
      %17 = vsyncadd [#allocation3], %s16
      %s18 = sshll.u32 [#allocation2], 4
      %s19 = int_to_ptr.vmem [resolvable:$true] %s18
      %24 = dma.hbm_to_vmem [thread:$0]  %s0, 256, %s19, [#allocation3], 128, 128, 8
    $region5: #{tpu_custom_call.1} parent=1 // pred_fallthru
      _
    // Predicated region
    $region6: #{tpu_custom_call.1} parent=1 // pred_check
      _
    $region7: #{tpu_custom_call.1} parent=1 // pred_check_branch
      %26 = sbr.rel (0) target = $region9
    $region8: #{tpu_custom_call.1} parent=1 // pred_region
      %s28 = ssub.s32 512, 512
      %29 = vsyncadd [#allocation6], %s28
      %s30 = sshll.u32 [#allocation5], 4
      %s31 = int_to_ptr.vmem [resolvable:$true] %s30
      %36 = dma.hbm_to_vmem [thread:$0]  %s1, 512, %s31, [#allocation6], 128, 128, 8
    $region9: #{tpu_custom_call.1} parent=1 // pred_fallthru
      _
    // Predicated region
    $region10: #{tpu_custom_call.1} parent=1 // pred_check
      _
    $region11: #{tpu_custom_call.1} parent=1 // pred_check_branch
      %38 = sbr.rel (0) target = $region13
    $region12: #{tpu_custom_call.1} parent=1 // pred_region
      %s40 = ssub.s32 640, 640
      %41 = vsyncadd [#allocation6], %s40
      %s42 = sshll.u32 [#allocation7], 4
      %s43 = int_to_ptr.vmem [resolvable:$true] %s42
      %48 = dma.hbm_to_vmem [thread:$0]  %s2, 640, %s43, [#allocation6], 128, 128, 8
    $region13: #{tpu_custom_call.1} parent=1 // pred_fallthru
      _
    // Predicated region
    $region14: #{tpu_custom_call.1} parent=1 // pred_check
      _
    $region15: #{tpu_custom_call.1} parent=1 // pred_check_branch
      %50 = sbr.rel (0) target = $region17
    $region16: #{tpu_custom_call.1} parent=1 // pred_region
      _
    $region17: #{tpu_custom_call.1} parent=1 // pred_fallthru
      _
    // Predicated region
    $region18: #{tpu_custom_call.1} parent=1 // pred_check
      _
    $region19: #{tpu_custom_call.1} parent=1 // pred_check_branch
      %52 = sbr.rel (0) target = $region21
    $region20: #{tpu_custom_call.1} parent=1 // pred_region
      _
    $region21: #{tpu_custom_call.1} parent=1 // pred_fallthru
      _
    // Predicated region
    $region22: #{tpu_custom_call.1} parent=1 // pred_check
      _
    $region23: #{tpu_custom_call.1} parent=1 // pred_check_branch
      %54 = sbr.rel (0) target = $region25
    $region24: #{tpu_custom_call.1} parent=1 // pred_region
      %55 = dma.done [#allocation3], 256
    $region25: #{tpu_custom_call.1} parent=1 // pred_fallthru
      _
    // Predicated region
    $region26: #{tpu_custom_call.1} parent=1 // pred_check
      _
    $region27: #{tpu_custom_call.1} parent=1 // pred_check_branch
      %57 = sbr.rel (0) target = $region29
    $region28: #{tpu_custom_call.1} parent=1 // pred_region
      %58 = dma.done [#allocation6], 512
    $region29: #{tpu_custom_call.1} parent=1 // pred_fallthru
      _
    // Predicated region
    $region30: #{tpu_custom_call.1} parent=1 // pred_check
      _
    $region31: #{tpu_custom_call.1} parent=1 // pred_check_branch
      %60 = sbr.rel (0) target = $region33
    $region32: #{tpu_custom_call.1} parent=1 // pred_region
      %61 = dma.done [#allocation6], 640
    $region33: #{tpu_custom_call.1} parent=1 // pred_fallthru
      _
    %v62 = vld [vmem:[#allocation2] sm:$0xff]
    %v63 = vld [vmem:[#allocation2 + $0x8] sm:$0xff]
    %v64 = vld [vmem:[#allocation5] sm:$0xff]
    %v65 = vld [vmem:[#allocation5 + $0x8] sm:$0xff]
    %v66 = vld [vmem:[#allocation5 + $0x10] sm:$0xff]
    %v67 = vld [vmem:[#allocation5 + $0x18] sm:$0xff]
    %v68 = vmul.f32 %v64, %v64
    %v69 = vmul.f32 %v65, %v65
    %v70 = vmul.f32 %v66, %v66
    %v71 = vmul.f32 %v67, %v67
    %v72 = vmul.f32 %v62, %v62
    %v73 = vmul.f32 %v63, %v63
    %vm74 = vcmask 277504
    %v75 = vsel %vm74, %v72, 0.0
    %76 = vadd.xlane.f32.xlu0 %v75
    %v77 = vpop.xlane.xlu0 %76
    %v78 = vsel %vm74, %v73, 0.0
    %79 = vadd.xlane.f32.xlu0 %v78
    %v80 = vpop.xlane.xlu0 %79
    %v81 = vmul.f32 %v77, 0.5
    %v82 = vmul.f32 %v80, 0.5
    %v84 = vsel %vm74, 0.5, 0
    %v87 = vsel %vm74, %v68, 0
    %v90 = vsel %vm74, %v69, 0
    %92 = vmatprep.subr.mxu0 0.0
    %93 = vmatpush1.xpose.msra.mxu0 %v87
    %94 = vmatprep.subr.mxu0 0.0
    %95 = vmatpush1.xpose.msra.mxu0 %v90
    %96 = vmatprep.subr.mxu0 0.0
    %97 = vmatpush1.xpose.msra.mxu0 0.0
    %98 = vmatprep.subr.mxu0 0.0
    %99 = vmatpush1.xpose.msra.mxu0 0.0
    %100 = vmatprep.subr.mxu0 0.0
    %101 = vmatpush1.xpose.msra.mxu0 0.0
    %102 = vmatprep.subr.mxu0 0.0
    %103 = vmatpush1.xpose.msra.mxu0 0.0
    %104 = vmatprep.subr.mxu0 0.0
    %105 = vmatpush1.xpose.msra.mxu0 0.0
    %106 = vmatprep.subr.mxu0 0.0
    %107 = vmatpush1.xpose.msra.mxu0 0.0
    %108 = vmatprep.subr.mxu0 0.0
    %109 = vmatpush1.xpose.msra.mxu0 0.0
    %110 = vmatprep.subr.mxu0 0.0
    %111 = vmatpush1.xpose.msra.mxu0 0.0
    %112 = vmatprep.subr.mxu0 0.0
    %113 = vmatpush1.xpose.msra.mxu0 0.0
    %114 = vmatprep.subr.mxu0 0.0
    %115 = vmatpush1.xpose.msra.mxu0 0.0
    %116 = vmatprep.subr.mxu0 0.0
    %117 = vmatpush1.xpose.msra.mxu0 0.0
    %118 = vmatprep.subr.mxu0 0.0
    %119 = vmatpush1.xpose.msra.mxu0 0.0
    %120 = vmatprep.subr.mxu0 0.0
    %121 = vmatpush1.xpose.msra.mxu0 0.0
    %122 = vmatprep.subr.mxu0 0.0
    %123 = vmatpush1.xpose.msra.mxu0 0.0
    %124 = vmatprep.subr.mxu0 0.0
    %125 = vmatpush1.xpose.msra.mxu0 0.0
    %126 = vmatprep.subr.mxu0 0.0
    %127 = vmatpush1.xpose.msra.mxu0 0.0
    %128 = vmatprep.subr.mxu0 0.0
    %129 = vmatpush1.xpose.msra.mxu0 0.0
    %130 = vmatprep.subr.mxu0 0.0
    %131 = vmatpush1.xpose.msra.mxu0 0.0
    %132 = vmatprep.subr.mxu0 0.0
    %133 = vmatpush1.xpose.msra.mxu0 0.0
    %134 = vmatprep.subr.mxu0 0.0
    %135 = vmatpush1.xpose.msra.mxu0 0.0
    %136 = vmatprep.subr.mxu0 0.0
    %137 = vmatpush1.xpose.msra.mxu0 0.0
    %138 = vmatprep.subr.mxu0 0.0
    %139 = vmatpush1.xpose.msra.mxu0 0.0
    %140 = vmatprep.subr.mxu0 0.0
    %141 = vmatpush1.xpose.msra.mxu0 0.0
    %142 = vmatprep.subr.mxu0 0.0
    %143 = vmatpush1.xpose.msra.mxu0 0.0
    %144 = vmatprep.subr.mxu0 0.0
    %145 = vmatpush1.xpose.msra.mxu0 0.0
    %146 = vmatprep.subr.mxu0 0.0
    %147 = vmatpush1.xpose.msra.mxu0 0.0
    %148 = vmatprep.subr.mxu0 0.0
    %149 = vmatpush1.xpose.msra.mxu0 0.0
    %150 = vmatprep.subr.mxu0 0.0
    %151 = vmatpush1.xpose.msra.mxu0 0.0
    %152 = vmatprep.subr.mxu0 0.0
    %153 = vmatpush1.xpose.msra.mxu0 0.0
    %154 = vmatprep.subr.mxu0 0.0
    %155 = vmatpush1.xpose.msra.mxu0 0.0
    %156 = vmatprep.mubr.f32.mxu0 0.0
    %157 = vmatmul.mubr.f32.gmra.mrb[0].mxu0 %v84
    %v158 = vpop.f32.mrb[0].mxu0
    %v159 = vadd.f32 0.0, %v158
    %v160 = vpop.f32.mrb[0].mxu0
    %161 = vdwg.mxu0
    %v163 = vsel %vm74, %v70, 0
    %v166 = vsel %vm74, %v71, 0
    %168 = vmatprep.subr.mxu0 0.0
    %169 = vmatpush1.xpose.msra.mxu0 %v163
    %170 = vmatprep.subr.mxu0 0.0
    %171 = vmatpush1.xpose.msra.mxu0 %v166
    %172 = vmatprep.subr.mxu0 0.0
    %173 = vmatpush1.xpose.msra.mxu0 0.0
    %174 = vmatprep.subr.mxu0 0.0
    %175 = vmatpush1.xpose.msra.mxu0 0.0
    %176 = vmatprep.subr.mxu0 0.0
    %177 = vmatpush1.xpose.msra.mxu0 0.0
    %178 = vmatprep.subr.mxu0 0.0
    %179 = vmatpush1.xpose.msra.mxu0 0.0
    %180 = vmatprep.subr.mxu0 0.0
    %181 = vmatpush1.xpose.msra.mxu0 0.0
    %182 = vmatprep.subr.mxu0 0.0
    %183 = vmatpush1.xpose.msra.mxu0 0.0
    %184 = vmatprep.subr.mxu0 0.0
    %185 = vmatpush1.xpose.msra.mxu0 0.0
    %186 = vmatprep.subr.mxu0 0.0
    %187 = vmatpush1.xpose.msra.mxu0 0.0
    %188 = vmatprep.subr.mxu0 0.0
    %189 = vmatpush1.xpose.msra.mxu0 0.0
    %190 = vmatprep.subr.mxu0 0.0
    %191 = vmatpush1.xpose.msra.mxu0 0.0
    %192 = vmatprep.subr.mxu0 0.0
    %193 = vmatpush1.xpose.msra.mxu0 0.0
    %194 = vmatprep.subr.mxu0 0.0
    %195 = vmatpush1.xpose.msra.mxu0 0.0
    %196 = vmatprep.subr.mxu0 0.0
    %197 = vmatpush1.xpose.msra.mxu0 0.0
    %198 = vmatprep.subr.mxu0 0.0
    %199 = vmatpush1.xpose.msra.mxu0 0.0
    %200 = vmatprep.subr.mxu0 0.0
    %201 = vmatpush1.xpose.msra.mxu0 0.0
    %202 = vmatprep.subr.mxu0 0.0
    %203 = vmatpush1.xpose.msra.mxu0 0.0
    %204 = vmatprep.subr.mxu0 0.0
    %205 = vmatpush1.xpose.msra.mxu0 0.0
    %206 = vmatprep.subr.mxu0 0.0
    %207 = vmatpush1.xpose.msra.mxu0 0.0
    %208 = vmatprep.subr.mxu0 0.0
    %209 = vmatpush1.xpose.msra.mxu0 0.0
    %210 = vmatprep.subr.mxu0 0.0
    %211 = vmatpush1.xpose.msra.mxu0 0.0
    %212 = vmatprep.subr.mxu0 0.0
    %213 = vmatpush1.xpose.msra.mxu0 0.0
    %214 = vmatprep.subr.mxu0 0.0
    %215 = vmatpush1.xpose.msra.mxu0 0.0
    %216 = vmatprep.subr.mxu0 0.0
    %217 = vmatpush1.xpose.msra.mxu0 0.0
    %218 = vmatprep.subr.mxu0 0.0
    %219 = vmatpush1.xpose.msra.mxu0 0.0
    %220 = vmatprep.subr.mxu0 0.0
    %221 = vmatpush1.xpose.msra.mxu0 0.0
    %222 = vmatprep.subr.mxu0 0.0
    %223 = vmatpush1.xpose.msra.mxu0 0.0
    %224 = vmatprep.subr.mxu0 0.0
    %225 = vmatpush1.xpose.msra.mxu0 0.0
    %226 = vmatprep.subr.mxu0 0.0
    %227 = vmatpush1.xpose.msra.mxu0 0.0
    %228 = vmatprep.subr.mxu0 0.0
    %229 = vmatpush1.xpose.msra.mxu0 0.0
    %230 = vmatprep.subr.mxu0 0.0
    %231 = vmatpush1.xpose.msra.mxu0 0.0
    %232 = vmatprep.mubr.f32.mxu0 0.0
    %233 = vmatmul.mubr.f32.gmra.mrb[0].mxu0 %v84
    %v234 = vpop.f32.mrb[0].mxu0
    %v235 = vadd.f32 0.0, %v234
    %v236 = vpop.f32.mrb[0].mxu0
    %237 = vdwg.mxu0
    %v239 = vsel %vm74, %v62, 0
    %v242 = vsel %vm74, %v64, 0
    %v245 = vsel %vm74, %v65, 0
    %247 = vmatprep.subr.mxu0 0.0
    %248 = vmatpush1.xpose.msra.mxu0 %v242
    %249 = vmatprep.subr.mxu0 0.0
    %250 = vmatpush1.xpose.msra.mxu0 %v245
    %251 = vmatprep.subr.mxu0 0.0
    %252 = vmatpush1.xpose.msra.mxu0 0.0
    %253 = vmatprep.subr.mxu0 0.0
    %254 = vmatpush1.xpose.msra.mxu0 0.0
    %255 = vmatprep.subr.mxu0 0.0
    %256 = vmatpush1.xpose.msra.mxu0 0.0
    %257 = vmatprep.subr.mxu0 0.0
    %258 = vmatpush1.xpose.msra.mxu0 0.0
    %259 = vmatprep.subr.mxu0 0.0
    %260 = vmatpush1.xpose.msra.mxu0 0.0
    %261 = vmatprep.subr.mxu0 0.0
    %262 = vmatpush1.xpose.msra.mxu0 0.0
    %263 = vmatprep.subr.mxu0 0.0
    %264 = vmatpush1.xpose.msra.mxu0 0.0
    %265 = vmatprep.subr.mxu0 0.0
    %266 = vmatpush1.xpose.msra.mxu0 0.0
    %267 = vmatprep.subr.mxu0 0.0
    %268 = vmatpush1.xpose.msra.mxu0 0.0
    %269 = vmatprep.subr.mxu0 0.0
    %270 = vmatpush1.xpose.msra.mxu0 0.0
    %271 = vmatprep.subr.mxu0 0.0
    %272 = vmatpush1.xpose.msra.mxu0 0.0
    %273 = vmatprep.subr.mxu0 0.0
    %274 = vmatpush1.xpose.msra.mxu0 0.0
    %275 = vmatprep.subr.mxu0 0.0
    %276 = vmatpush1.xpose.msra.mxu0 0.0
    %277 = vmatprep.subr.mxu0 0.0
    %278 = vmatpush1.xpose.msra.mxu0 0.0
    %279 = vmatprep.subr.mxu0 0.0
    %280 = vmatpush1.xpose.msra.mxu0 0.0
    %281 = vmatprep.subr.mxu0 0.0
    %282 = vmatpush1.xpose.msra.mxu0 0.0
    %283 = vmatprep.subr.mxu0 0.0
    %284 = vmatpush1.xpose.msra.mxu0 0.0
    %285 = vmatprep.subr.mxu0 0.0
    %286 = vmatpush1.xpose.msra.mxu0 0.0
    %287 = vmatprep.subr.mxu0 0.0
    %288 = vmatpush1.xpose.msra.mxu0 0.0
    %289 = vmatprep.subr.mxu0 0.0
    %290 = vmatpush1.xpose.msra.mxu0 0.0
    %291 = vmatprep.subr.mxu0 0.0
    %292 = vmatpush1.xpose.msra.mxu0 0.0
    %293 = vmatprep.subr.mxu0 0.0
    %294 = vmatpush1.xpose.msra.mxu0 0.0
    %295 = vmatprep.subr.mxu0 0.0
    %296 = vmatpush1.xpose.msra.mxu0 0.0
    %297 = vmatprep.subr.mxu0 0.0
    %298 = vmatpush1.xpose.msra.mxu0 0.0
    %299 = vmatprep.subr.mxu0 0.0
    %300 = vmatpush1.xpose.msra.mxu0 0.0
    %301 = vmatprep.subr.mxu0 0.0
    %302 = vmatpush1.xpose.msra.mxu0 0.0
    %303 = vmatprep.subr.mxu0 0.0
    %304 = vmatpush1.xpose.msra.mxu0 0.0
    %305 = vmatprep.subr.mxu0 0.0
    %306 = vmatpush1.xpose.msra.mxu0 0.0
    %307 = vmatprep.subr.mxu0 0.0
    %308 = vmatpush1.xpose.msra.mxu0 0.0
    %309 = vmatprep.subr.mxu0 0.0
    %310 = vmatpush1.xpose.msra.mxu0 0.0
    %311 = vmatprep.mubr.f32.mxu0 0.0
    %312 = vmatmul.mubr.f32.gmra.mrb[0].mxu0 %v239
    %v313 = vpop.f32.mrb[0].mxu0
    %v314 = vadd.f32 0.0, %v313
    %v315 = vpop.f32.mrb[0].mxu0
    %316 = vdwg.mxu0
    %v318 = vsel %vm74, %v63, 0
    %v321 = vsel %vm74, %v66, 0
    %v324 = vsel %vm74, %v67, 0
    %326 = vmatprep.subr.mxu0 0.0
    %327 = vmatpush1.xpose.msra.mxu0 %v321
    %328 = vmatprep.subr.mxu0 0.0
    %329 = vmatpush1.xpose.msra.mxu0 %v324
    %330 = vmatprep.subr.mxu0 0.0
    %331 = vmatpush1.xpose.msra.mxu0 0.0
    %332 = vmatprep.subr.mxu0 0.0
    %333 = vmatpush1.xpose.msra.mxu0 0.0
    %334 = vmatprep.subr.mxu0 0.0
    %335 = vmatpush1.xpose.msra.mxu0 0.0
    %336 = vmatprep.subr.mxu0 0.0
    %337 = vmatpush1.xpose.msra.mxu0 0.0
    %338 = vmatprep.subr.mxu0 0.0
    %339 = vmatpush1.xpose.msra.mxu0 0.0
    %340 = vmatprep.subr.mxu0 0.0
    %341 = vmatpush1.xpose.msra.mxu0 0.0
    %342 = vmatprep.subr.mxu0 0.0
    %343 = vmatpush1.xpose.msra.mxu0 0.0
    %344 = vmatprep.subr.mxu0 0.0
    %345 = vmatpush1.xpose.msra.mxu0 0.0
    %346 = vmatprep.subr.mxu0 0.0
    %347 = vmatpush1.xpose.msra.mxu0 0.0
    %348 = vmatprep.subr.mxu0 0.0
    %349 = vmatpush1.xpose.msra.mxu0 0.0
    %350 = vmatprep.subr.mxu0 0.0
    %351 = vmatpush1.xpose.msra.mxu0 0.0
    %352 = vmatprep.subr.mxu0 0.0
    %353 = vmatpush1.xpose.msra.mxu0 0.0
    %354 = vmatprep.subr.mxu0 0.0
    %355 = vmatpush1.xpose.msra.mxu0 0.0
    %356 = vmatprep.subr.mxu0 0.0
    %357 = vmatpush1.xpose.msra.mxu0 0.0
    %358 = vmatprep.subr.mxu0 0.0
    %359 = vmatpush1.xpose.msra.mxu0 0.0
    %360 = vmatprep.subr.mxu0 0.0
    %361 = vmatpush1.xpose.msra.mxu0 0.0
    %362 = vmatprep.subr.mxu0 0.0
    %363 = vmatpush1.xpose.msra.mxu0 0.0
    %364 = vmatprep.subr.mxu0 0.0
    %365 = vmatpush1.xpose.msra.mxu0 0.0
    %366 = vmatprep.subr.mxu0 0.0
    %367 = vmatpush1.xpose.msra.mxu0 0.0
    %368 = vmatprep.subr.mxu0 0.0
    %369 = vmatpush1.xpose.msra.mxu0 0.0
    %370 = vmatprep.subr.mxu0 0.0
    %371 = vmatpush1.xpose.msra.mxu0 0.0
    %372 = vmatprep.subr.mxu0 0.0
    %373 = vmatpush1.xpose.msra.mxu0 0.0
    %374 = vmatprep.subr.mxu0 0.0
    %375 = vmatpush1.xpose.msra.mxu0 0.0
    %376 = vmatprep.subr.mxu0 0.0
    %377 = vmatpush1.xpose.msra.mxu0 0.0
    %378 = vmatprep.subr.mxu0 0.0
    %379 = vmatpush1.xpose.msra.mxu0 0.0
    %380 = vmatprep.subr.mxu0 0.0
    %381 = vmatpush1.xpose.msra.mxu0 0.0
    %382 = vmatprep.subr.mxu0 0.0
    %383 = vmatpush1.xpose.msra.mxu0 0.0
    %384 = vmatprep.subr.mxu0 0.0
    %385 = vmatpush1.xpose.msra.mxu0 0.0
    %386 = vmatprep.subr.mxu0 0.0
    %387 = vmatpush1.xpose.msra.mxu0 0.0
    %388 = vmatprep.subr.mxu0 0.0
    %389 = vmatpush1.xpose.msra.mxu0 0.0
    %390 = vmatprep.mubr.f32.mxu0 0.0
    %391 = vmatmul.mubr.f32.gmra.mrb[0].mxu0 %v318
    %v392 = vpop.f32.mrb[0].mxu0
    %v393 = vadd.f32 0.0, %v392
    %v394 = vpop.f32.mrb[0].mxu0
    %395 = vdwg.mxu0
    %v396 = vlaneseq
    %v397 = vshrl.u32 %v396, 7
    %v398 = vsub.s32 0, %v397
    %v399 = vrot.slane %v159, %v398
    %v400 = vlaneseq
    %v401 = vshrl.u32 %v400, 7
    %v402 = vsub.s32 0, %v401
    %v403 = vrot.slane %v235, %v402
    %v404 = vadd.f32 %v81, %v399
    %v405 = vadd.f32 %v82, %v403
    %v406 = vsub.f32 %v404, %v314
    %v407 = vsub.f32 %v405, %v393
    %v408 = vmax.f32 %v406, 0.0
    %v409 = vmax.f32 %v407, 0.0
    %v410 = vld [vmem:[#allocation7] sm:$0xff]
    %v411 = vld [vmem:[#allocation7 + $0x8] sm:$0xff]
    %v412 = vld [vmem:[#allocation7 + $0x10] sm:$0xff]
    %v413 = vld [vmem:[#allocation7 + $0x18] sm:$0xff]
    %v414 = vld [vmem:[#allocation7 + $0x20] sm:$0x3]
    %v415 = vld [vmem:[%s3] sm:$0x1]
    %v417 = vlaneseq
    %v418 = vshrl.u32 %v417, 7
    %v419 = vsub.s32 0, %v418
    %v420 = vrot.slane %v415, %v419
    %vm422 = vcmask 1041408
    %v424 = vsel %vm422, %v414, 0
    %426 = vmatprep.subr.mxu0 0.0
    %427 = vmatpush1.msra.mxu0 %v410
    %428 = vmatprep.subr.mxu0 0.0
    %429 = vmatpush1.msra.mxu0 %v411
    %430 = vmatprep.subr.mxu0 0.0
    %431 = vmatpush1.msra.mxu0 %v412
    %432 = vmatprep.subr.mxu0 0.0
    %433 = vmatpush1.msra.mxu0 %v413
    %434 = vmatprep.subr.mxu0 0.0
    %435 = vmatpush1.msra.mxu0 %v424
    %436 = vmatprep.subr.mxu0 0.0
    %437 = vmatpush1.msra.mxu0 0.0
    %438 = vmatprep.subr.mxu0 0.0
    %439 = vmatpush1.msra.mxu0 0.0
    %440 = vmatprep.subr.mxu0 0.0
    %441 = vmatpush1.msra.mxu0 0.0
    %442 = vmatprep.subr.mxu0 0.0
    %443 = vmatpush1.msra.mxu0 0.0
    %444 = vmatprep.subr.mxu0 0.0
    %445 = vmatpush1.msra.mxu0 0.0
    %446 = vmatprep.subr.mxu0 0.0
    %447 = vmatpush1.msra.mxu0 0.0
    %448 = vmatprep.subr.mxu0 0.0
    %449 = vmatpush1.msra.mxu0 0.0
    %450 = vmatprep.subr.mxu0 0.0
    %451 = vmatpush1.msra.mxu0 0.0
    %452 = vmatprep.subr.mxu0 0.0
    %453 = vmatpush1.msra.mxu0 0.0
    %454 = vmatprep.subr.mxu0 0.0
    %455 = vmatpush1.msra.mxu0 0.0
    %456 = vmatprep.subr.mxu0 0.0
    %457 = vmatpush1.msra.mxu0 0.0
    %458 = vmatprep.subr.mxu0 0.0
    %459 = vmatpush1.msra.mxu0 0.0
    %460 = vmatprep.subr.mxu0 0.0
    %461 = vmatpush1.msra.mxu0 0.0
    %462 = vmatprep.subr.mxu0 0.0
    %463 = vmatpush1.msra.mxu0 0.0
    %464 = vmatprep.subr.mxu0 0.0
    %465 = vmatpush1.msra.mxu0 0.0
    %466 = vmatprep.subr.mxu0 0.0
    %467 = vmatpush1.msra.mxu0 0.0
    %468 = vmatprep.subr.mxu0 0.0
    %469 = vmatpush1.msra.mxu0 0.0
    %470 = vmatprep.subr.mxu0 0.0
    %471 = vmatpush1.msra.mxu0 0.0
    %472 = vmatprep.subr.mxu0 0.0
    %473 = vmatpush1.msra.mxu0 0.0
    %474 = vmatprep.subr.mxu0 0.0
    %475 = vmatpush1.msra.mxu0 0.0
    %476 = vmatprep.subr.mxu0 0.0
    %477 = vmatpush1.msra.mxu0 0.0
    %478 = vmatprep.subr.mxu0 0.0
    %479 = vmatpush1.msra.mxu0 0.0
    %480 = vmatprep.subr.mxu0 0.0
    %481 = vmatpush1.msra.mxu0 0.0
    %482 = vmatprep.subr.mxu0 0.0
    %483 = vmatpush1.msra.mxu0 0.0
    %484 = vmatprep.subr.mxu0 0.0
    %485 = vmatpush1.msra.mxu0 0.0
    %486 = vmatprep.subr.mxu0 0.0
    %487 = vmatpush1.msra.mxu0 0.0
    %488 = vmatprep.subr.mxu0 0.0
    %489 = vmatpush1.msra.mxu0 0.0
    %490 = vmatprep.mubr.f32.mxu0 0.0
    %491 = vmatmul.mubr.f32.gmra.mrb[0].mxu0 %v239
    %v492 = vpop.f32.mrb[0].mxu0
    %v493 = vadd.f32 %v420, %v492
    %v494 = vpop.f32.mrb[0].mxu0
    %495 = vmatprep.mubr.f32.mxu0 0.0
    %496 = vmatmul.mubr.f32.gmra.mrb[0].mxu0 %v318
    %v497 = vpop.f32.mrb[0].mxu0
    %v498 = vadd.f32 %v420, %v497
    %v499 = vpop.f32.mrb[0].mxu0
    %500 = vdwg.mxu0
    %v501 = vmax.f32 %v493, 0.0
    %v502 = vmax.f32 %v498, 0.0
    %503 = vmatprep.subr.mxu0 0.0
    %504 = vmatpush1.msra.mxu0 %v410
    %505 = vmatprep.subr.mxu0 0.0
    %506 = vmatpush1.msra.mxu0 %v411
    %507 = vmatprep.subr.mxu0 0.0
    %508 = vmatpush1.msra.mxu0 %v412
    %509 = vmatprep.subr.mxu0 0.0
    %510 = vmatpush1.msra.mxu0 %v413
    %511 = vmatprep.subr.mxu0 0.0
    %512 = vmatpush1.msra.mxu0 %v424
    %513 = vmatprep.subr.mxu0 0.0
    %514 = vmatpush1.msra.mxu0 0.0
    %515 = vmatprep.subr.mxu0 0.0
    %516 = vmatpush1.msra.mxu0 0.0
    %517 = vmatprep.subr.mxu0 0.0
    %518 = vmatpush1.msra.mxu0 0.0
    %519 = vmatprep.subr.mxu0 0.0
    %520 = vmatpush1.msra.mxu0 0.0
    %521 = vmatprep.subr.mxu0 0.0
    %522 = vmatpush1.msra.mxu0 0.0
    %523 = vmatprep.subr.mxu0 0.0
    %524 = vmatpush1.msra.mxu0 0.0
    %525 = vmatprep.subr.mxu0 0.0
    %526 = vmatpush1.msra.mxu0 0.0
    %527 = vmatprep.subr.mxu0 0.0
    %528 = vmatpush1.msra.mxu0 0.0
    %529 = vmatprep.subr.mxu0 0.0
    %530 = vmatpush1.msra.mxu0 0.0
    %531 = vmatprep.subr.mxu0 0.0
    %532 = vmatpush1.msra.mxu0 0.0
    %533 = vmatprep.subr.mxu0 0.0
    %534 = vmatpush1.msra.mxu0 0.0
    %535 = vmatprep.subr.mxu0 0.0
    %536 = vmatpush1.msra.mxu0 0.0
    %537 = vmatprep.subr.mxu0 0.0
    %538 = vmatpush1.msra.mxu0 0.0
    %539 = vmatprep.subr.mxu0 0.0
    %540 = vmatpush1.msra.mxu0 0.0
    %541 = vmatprep.subr.mxu0 0.0
    %542 = vmatpush1.msra.mxu0 0.0
    %543 = vmatprep.subr.mxu0 0.0
    %544 = vmatpush1.msra.mxu0 0.0
    %545 = vmatprep.subr.mxu0 0.0
    %546 = vmatpush1.msra.mxu0 0.0
    %547 = vmatprep.subr.mxu0 0.0
    %548 = vmatpush1.msra.mxu0 0.0
    %549 = vmatprep.subr.mxu0 0.0
    %550 = vmatpush1.msra.mxu0 0.0
    %551 = vmatprep.subr.mxu0 0.0
    %552 = vmatpush1.msra.mxu0 0.0
    %553 = vmatprep.subr.mxu0 0.0
    %554 = vmatpush1.msra.mxu0 0.0
    %555 = vmatprep.subr.mxu0 0.0
    %556 = vmatpush1.msra.mxu0 0.0
    %557 = vmatprep.subr.mxu0 0.0
    %558 = vmatpush1.msra.mxu0 0.0
    %559 = vmatprep.subr.mxu0 0.0
    %560 = vmatpush1.msra.mxu0 0.0
    %561 = vmatprep.subr.mxu0 0.0
    %562 = vmatpush1.msra.mxu0 0.0
    %563 = vmatprep.subr.mxu0 0.0
    %564 = vmatpush1.msra.mxu0 0.0
    %565 = vmatprep.subr.mxu0 0.0
    %566 = vmatpush1.msra.mxu0 0.0
    %567 = vmatprep.mubr.f32.mxu0 0.0
    %568 = vmatmul.mubr.f32.gmra.mrb[0].mxu0 %v242
    %v569 = vpop.f32.mrb[0].mxu0
    %v570 = vadd.f32 %v420, %v569
    %v571 = vpop.f32.mrb[0].mxu0
    %572 = vmatprep.mubr.f32.mxu0 0.0
    %573 = vmatmul.mubr.f32.gmra.mrb[0].mxu0 %v245
    %v574 = vpop.f32.mrb[0].mxu0
    %v575 = vadd.f32 %v420, %v574
    %v576 = vpop.f32.mrb[0].mxu0
    %577 = vmatprep.mubr.f32.mxu0 0.0
    %578 = vmatmul.mubr.f32.gmra.mrb[0].mxu0 %v321
    %v579 = vpop.f32.mrb[0].mxu0
    %v580 = vadd.f32 %v420, %v579
    %v581 = vpop.f32.mrb[0].mxu0
    %582 = vmatprep.mubr.f32.mxu0 0.0
    %583 = vmatmul.mubr.f32.gmra.mrb[0].mxu0 %v324
    %v584 = vpop.f32.mrb[0].mxu0
    %v585 = vadd.f32 %v420, %v584
    %v586 = vpop.f32.mrb[0].mxu0
    %587 = vdwg.mxu0
    %v588 = vmax.f32 %v570, 0.0
    %v589 = vmax.f32 %v575, 0.0
    %v590 = vmax.f32 %v580, 0.0
    %v591 = vmax.f32 %v585, 0.0
    %v592 = vld [vmem:[%s4] sm:$0x1]
    %v594 = vlaneseq
    %v595 = vshrl.u32 %v594, 7
    %v596 = vsub.s32 0, %v595
    %v597 = vrot.slane %v592, %v596
    %v599 = vmul.f32 %v501, %v597
    %600 = vadd.xlane.f32.xlu0 %v599
    %v601 = vpop.xlane.xlu0 %600
    %v602 = vmul.f32 %v502, %v597
    %603 = vadd.xlane.f32.xlu0 %v602
    %v604 = vpop.xlane.xlu0 %603
    %v605 = vand.u32 2147483647, %v601
    %v606 = vand.u32 2147483647, %v604
    %v607 = vadd.f32 %v605, 0.5
    %v608 = vadd.f32 %v606, 0.5
    %609 = vmatprep.subr.mxu0 0.0
    %610 = vmatpush1.xpose.msra.mxu0 %v588
    %611 = vmatprep.subr.mxu0 0.0
    %612 = vmatpush1.xpose.msra.mxu0 %v589
    %613 = vmatprep.subr.mxu0 0.0
    %614 = vmatpush1.xpose.msra.mxu0 0.0
    %615 = vmatprep.subr.mxu0 0.0
    %616 = vmatpush1.xpose.msra.mxu0 0.0
    %617 = vmatprep.subr.mxu0 0.0
    %618 = vmatpush1.xpose.msra.mxu0 0.0
    %619 = vmatprep.subr.mxu0 0.0
    %620 = vmatpush1.xpose.msra.mxu0 0.0
    %621 = vmatprep.subr.mxu0 0.0
    %622 = vmatpush1.xpose.msra.mxu0 0.0
    %623 = vmatprep.subr.mxu0 0.0
    %624 = vmatpush1.xpose.msra.mxu0 0.0
    %625 = vmatprep.subr.mxu0 0.0
    %626 = vmatpush1.xpose.msra.mxu0 0.0
    %627 = vmatprep.subr.mxu0 0.0
    %628 = vmatpush1.xpose.msra.mxu0 0.0
    %629 = vmatprep.subr.mxu0 0.0
    %630 = vmatpush1.xpose.msra.mxu0 0.0
    %631 = vmatprep.subr.mxu0 0.0
    %632 = vmatpush1.xpose.msra.mxu0 0.0
    %633 = vmatprep.subr.mxu0 0.0
    %634 = vmatpush1.xpose.msra.mxu0 0.0
    %635 = vmatprep.subr.mxu0 0.0
    %636 = vmatpush1.xpose.msra.mxu0 0.0
    %637 = vmatprep.subr.mxu0 0.0
    %638 = vmatpush1.xpose.msra.mxu0 0.0
    %639 = vmatprep.subr.mxu0 0.0
    %640 = vmatpush1.xpose.msra.mxu0 0.0
    %641 = vmatprep.subr.mxu0 0.0
    %642 = vmatpush1.xpose.msra.mxu0 0.0
    %643 = vmatprep.subr.mxu0 0.0
    %644 = vmatpush1.xpose.msra.mxu0 0.0
    %645 = vmatprep.subr.mxu0 0.0
    %646 = vmatpush1.xpose.msra.mxu0 0.0
    %647 = vmatprep.subr.mxu0 0.0
    %648 = vmatpush1.xpose.msra.mxu0 0.0
    %649 = vmatprep.subr.mxu0 0.0
    %650 = vmatpush1.xpose.msra.mxu0 0.0
    %651 = vmatprep.subr.mxu0 0.0
    %652 = vmatpush1.xpose.msra.mxu0 0.0
    %653 = vmatprep.subr.mxu0 0.0
    %654 = vmatpush1.xpose.msra.mxu0 0.0
    %655 = vmatprep.subr.mxu0 0.0
    %656 = vmatpush1.xpose.msra.mxu0 0.0
    %657 = vmatprep.subr.mxu0 0.0
    %658 = vmatpush1.xpose.msra.mxu0 0.0
    %659 = vmatprep.subr.mxu0 0.0
    %660 = vmatpush1.xpose.msra.mxu0 0.0
    %661 = vmatprep.subr.mxu0 0.0
    %662 = vmatpush1.xpose.msra.mxu0 0.0
    %663 = vmatprep.subr.mxu0 0.0
    %664 = vmatpush1.xpose.msra.mxu0 0.0
    %665 = vmatprep.subr.mxu0 0.0
    %666 = vmatpush1.xpose.msra.mxu0 0.0
    %667 = vmatprep.subr.mxu0 0.0
    %668 = vmatpush1.xpose.msra.mxu0 0.0
    %669 = vmatprep.subr.mxu0 0.0
    %670 = vmatpush1.xpose.msra.mxu0 0.0
    %671 = vmatprep.subr.mxu0 0.0
    %672 = vmatpush1.xpose.msra.mxu0 0.0
    %673 = vmatprep.mubr.f32.mxu0 0.0
    %674 = vmatmul.mubr.f32.gmra.mrb[0].mxu0 %v592
    %v675 = vpop.f32.mrb[0].mxu0
    %v676 = vadd.f32 0.0, %v675
    %v677 = vpop.f32.mrb[0].mxu0
    %678 = vdwg.mxu0
    %679 = vmatprep.subr.mxu0 0.0
    %680 = vmatpush1.xpose.msra.mxu0 %v590
    %681 = vmatprep.subr.mxu0 0.0
    %682 = vmatpush1.xpose.msra.mxu0 %v591
    %683 = vmatprep.subr.mxu0 0.0
    %684 = vmatpush1.xpose.msra.mxu0 0.0
    %685 = vmatprep.subr.mxu0 0.0
    %686 = vmatpush1.xpose.msra.mxu0 0.0
    %687 = vmatprep.subr.mxu0 0.0
    %688 = vmatpush1.xpose.msra.mxu0 0.0
    %689 = vmatprep.subr.mxu0 0.0
    %690 = vmatpush1.xpose.msra.mxu0 0.0
    %691 = vmatprep.subr.mxu0 0.0
    %692 = vmatpush1.xpose.msra.mxu0 0.0
    %693 = vmatprep.subr.mxu0 0.0
    %694 = vmatpush1.xpose.msra.mxu0 0.0
    %695 = vmatprep.subr.mxu0 0.0
    %696 = vmatpush1.xpose.msra.mxu0 0.0
    %697 = vmatprep.subr.mxu0 0.0
    %698 = vmatpush1.xpose.msra.mxu0 0.0
    %699 = vmatprep.subr.mxu0 0.0
    %700 = vmatpush1.xpose.msra.mxu0 0.0
    %701 = vmatprep.subr.mxu0 0.0
    %702 = vmatpush1.xpose.msra.mxu0 0.0
    %703 = vmatprep.subr.mxu0 0.0
    %704 = vmatpush1.xpose.msra.mxu0 0.0
    %705 = vmatprep.subr.mxu0 0.0
    %706 = vmatpush1.xpose.msra.mxu0 0.0
    %707 = vmatprep.subr.mxu0 0.0
    %708 = vmatpush1.xpose.msra.mxu0 0.0
    %709 = vmatprep.subr.mxu0 0.0
    %710 = vmatpush1.xpose.msra.mxu0 0.0
    %711 = vmatprep.subr.mxu0 0.0
    %712 = vmatpush1.xpose.msra.mxu0 0.0
    %713 = vmatprep.subr.mxu0 0.0
    %714 = vmatpush1.xpose.msra.mxu0 0.0
    %715 = vmatprep.subr.mxu0 0.0
    %716 = vmatpush1.xpose.msra.mxu0 0.0
    %717 = vmatprep.subr.mxu0 0.0
    %718 = vmatpush1.xpose.msra.mxu0 0.0
    %719 = vmatprep.subr.mxu0 0.0
    %720 = vmatpush1.xpose.msra.mxu0 0.0
    %721 = vmatprep.subr.mxu0 0.0
    %722 = vmatpush1.xpose.msra.mxu0 0.0
    %723 = vmatprep.subr.mxu0 0.0
    %724 = vmatpush1.xpose.msra.mxu0 0.0
    %725 = vmatprep.subr.mxu0 0.0
    %726 = vmatpush1.xpose.msra.mxu0 0.0
    %727 = vmatprep.subr.mxu0 0.0
    %728 = vmatpush1.xpose.msra.mxu0 0.0
    %729 = vmatprep.subr.mxu0 0.0
    %730 = vmatpush1.xpose.msra.mxu0 0.0
    %731 = vmatprep.subr.mxu0 0.0
    %732 = vmatpush1.xpose.msra.mxu0 0.0
    %733 = vmatprep.subr.mxu0 0.0
    %734 = vmatpush1.xpose.msra.mxu0 0.0
    %735 = vmatprep.subr.mxu0 0.0
    %736 = vmatpush1.xpose.msra.mxu0 0.0
    %737 = vmatprep.subr.mxu0 0.0
    %738 = vmatpush1.xpose.msra.mxu0 0.0
    %739 = vmatprep.subr.mxu0 0.0
    %740 = vmatpush1.xpose.msra.mxu0 0.0
    %741 = vmatprep.subr.mxu0 0.0
    %742 = vmatpush1.xpose.msra.mxu0 0.0
    %743 = vmatprep.mubr.f32.mxu0 0.0
    %744 = vmatmul.mubr.f32.gmra.mrb[0].mxu0 %v592
    %v745 = vpop.f32.mrb[0].mxu0
    %v746 = vadd.f32 0.0, %v745
    %v747 = vpop.f32.mrb[0].mxu0
    %748 = vdwg.mxu0
    %v749 = vand.u32 2147483647, %v676
    %v750 = vand.u32 2147483647, %v746
    %v751 = vadd.f32 %v749, 0.5
    %v752 = vadd.f32 %v750, 0.5
    %vm753 = vcmask 130048
    %v754 = vsel %vm753, %v408, inf
    %755 = vmin.xlane.f32.xlu0 %v754
    %v756 = vpop.xlane.xlu0 %755
    %v757 = vsel %vm753, %v409, inf
    %758 = vmin.xlane.f32.xlu0 %v757
    %v759 = vpop.xlane.xlu0 %758
    %v760 = vmin.f32 %v756, %v607
    %v761 = vmin.f32 %v759, %v608
    %v762 = vrot.slane %v754, 4
    %v763 = vmin.f32 %v754, %v762
    %v764 = vrot.slane %v763, 2
    %v765 = vmin.f32 %v763, %v764
    %v766 = vrot.slane %v765, 1
    %v767 = vmin.f32 %v765, %v766
    %v768 = vrot.slane %v757, 4
    %v769 = vmin.f32 %v757, %v768
    %v770 = vrot.slane %v769, 2
    %v771 = vmin.f32 %v769, %v770
    %v772 = vrot.slane %v771, 1
    %v773 = vmin.f32 %v771, %v772
    %v774 = vmin.f32 %v767, %v751
    %v775 = vmin.f32 %v773, %v752
    %vm776 = vcmask 7168
    %v777 = vsel %vm776, %v760, 0.0
    %v778 = vrot.slane %v777, 4
    %v779 = vadd.f32 %v777, %v778
    %v780 = vrot.slane %v779, 2
    %v781 = vadd.f32 %v779, %v780
    %v782 = vrot.slane %v781, 1
    %v783 = vadd.f32 %v781, %v782
    %v784 = vsel %vm776, %v761, 0.0
    %v785 = vrot.slane %v784, 4
    %v786 = vadd.f32 %v784, %v785
    %v787 = vrot.slane %v786, 2
    %v788 = vadd.f32 %v786, %v787
    %v789 = vrot.slane %v788, 1
    %v790 = vadd.f32 %v788, %v789
    %vm791 = vcmask 122880
    %v792 = vsel %vm791, %v774, 0.0
    %793 = vadd.xlane.f32.xlu0 %v792
    %v794 = vpop.xlane.xlu0 %793
    %v795 = vsel %vm791, %v775, 0.0
    %796 = vadd.xlane.f32.xlu0 %v795
    %v797 = vpop.xlane.xlu0 %796
    %v798 = vadd.f32 %v783, %v794
    %v799 = vadd.f32 %v790, %v797
    %v800 = vmul.f32 %v798, 0.041666668
    %v801 = vmul.f32 %v799, 0.041666668
    %v804 = vrot.slane %v801, 7
    %vm805 = vcmask 1041409
    %v806 = vsel %vm805, %v804, %v800
    %808 = vxpose.xlu0.b32.start [1/16] %v806, 128
    %809 = vxpose.xlu0.b32.cont [2/16] 0.0, 128
    %810 = vxpose.xlu0.b32.cont [3/16] 0.0, 128
    %811 = vxpose.xlu0.b32.cont [4/16] 0.0, 128
    %812 = vxpose.xlu0.b32.cont [5/16] 0.0, 128
    %813 = vxpose.xlu0.b32.cont [6/16] 0.0, 128
    %814 = vxpose.xlu0.b32.cont [7/16] 0.0, 128
    %815 = vxpose.xlu0.b32.cont [8/16] 0.0, 128
    %816 = vxpose.xlu0.b32.cont [9/16] 0.0, 128
    %817 = vxpose.xlu0.b32.cont [10/16] 0.0, 128
    %818 = vxpose.xlu0.b32.cont [11/16] 0.0, 128
    %819 = vxpose.xlu0.b32.cont [12/16] 0.0, 128
    %820 = vxpose.xlu0.b32.cont [13/16] 0.0, 128
    %821 = vxpose.xlu0.b32.cont [14/16] 0.0, 128
    %822 = vxpose.xlu0.b32.cont [15/16] 0.0, 128
    %823 = vxpose.xlu0.b32.end [16/16] 0.0, 128
    %v824 = vpop.trf.xlu0
    %v825 = vpop.trf.xlu0
    %v826 = vpop.trf.xlu0
    %v827 = vpop.trf.xlu0
    %v828 = vpop.trf.xlu0
    %v829 = vpop.trf.xlu0
    %v830 = vpop.trf.xlu0
    %v831 = vpop.trf.xlu0
    %v832 = vpop.trf.xlu0
    %v833 = vpop.trf.xlu0
    %v834 = vpop.trf.xlu0
    %v835 = vpop.trf.xlu0
    %v836 = vpop.trf.xlu0
    %v837 = vpop.trf.xlu0
    %v838 = vpop.trf.xlu0
    %v839 = vpop.trf.xlu0
    %vm840 = vcmask 8192
    %841 = vst.msk [vmem:[#allocation8] sm:$0x1] %vm840, %v824
    // Predicated region
    $region34: #{tpu_custom_call.1} parent=1 // pred_check
      _
    $region35: #{tpu_custom_call.1} parent=1 // pred_check_branch
      %843 = sbr.rel (0) target = $region37
    $region36: #{tpu_custom_call.1} parent=1 // pred_region
      %s845 = ssub.s32 16, 16
      %846 = vsyncadd [#allocation4], %s845
      %s848 = sshll.u32 [#allocation8], 4
      %s849 = int_to_ptr.vmem [resolvable:$true] %s848
      %851 = dma.vmem_to_hbm [thread:$0]  %s849, 16, %s5, [#allocation4]
    $region37: #{tpu_custom_call.1} parent=1 // pred_fallthru
      _
    // Predicated region
    $region38: #{tpu_custom_call.1} parent=1 // pred_check
      _
    $region39: #{tpu_custom_call.1} parent=1 // pred_check_branch
      %853 = sbr.rel (0) target = $region41
    $region40: #{tpu_custom_call.1} parent=1 // pred_region
      %854 = dma.done [#allocation4], 16
    $region41: #{tpu_custom_call.1} parent=1 // pred_fallthru
      _
    %855 = vsyncpa [#allocation3], 1
    %856 = vsyncpa [#allocation6], 1
    %857 = vsyncpa [#allocation4], 1

</llo_original>
